<compile_context>
chip_gen: v6e
topology: v6e:2x2x1
jax: 0.10.0
libtpu: 0.0.40
codegen_flags: <defaults>
</compile_context>

<pallas_src>
import math

import jax
import jax.numpy as jnp
from jax import lax
from jax.experimental import pallas as pl
from jax.experimental.pallas import tpu as pltpu

LANE = 128
MAX_TILE_ROWS = 2048            # 2048x128 f32 = 1 MiB per input per pipeline buffer
STRIP_ROWS = 64                 # in-block strip; multiple of every sublane packing (8/16/32)
VMEM_LIMIT_BYTES = 32 * 1024 * 1024
_LOG_SQRT_2PI = math.log(math.sqrt(2 * 3.14156))  # NOTE: 3.14156 (not pi) exactly as in PyTorch module


def _sublane_pack(*dtypes):
    """Rows per vreg: 8 for 4-byte dtypes, 16 for 2-byte, 32 for 1-byte."""
    pack = 8
    for dt in dtypes:
        pack = max(pack, 32 // jnp.dtype(dt).itemsize)
    return pack


def _logprob_plain(x, mu, rho):
    """Pure-JAX elementwise log-prob (used for tails, tiny tensors and the reference)."""
    x = x.astype(jnp.float32)
    mu = mu.astype(jnp.float32)
    rho = rho.astype(jnp.float32)
    sigma = jnp.log1p(jnp.exp(rho))
    return -_LOG_SQRT_2PI - jnp.log(sigma) - (x - mu) ** 2 / (2.0 * sigma ** 2)


def _make_kernel(tile_rows, strip_rows, num_blocks, valid_last):
    """Kernel closed over static tiling parameters (all Python ints)."""
    n_strips = tile_rows // strip_rows
    needs_mask = valid_last != tile_rows   # only the last block can hold garbage rows

    def strip_sum(refs, s, masked):
        x_ref, mu_ref, rho_ref = refs
        r0 = pl.multiple_of(s * strip_rows, strip_rows)
        sl = pl.ds(r0, strip_rows)
        x = x_ref[sl, :].astype(jnp.float32)
        mu = mu_ref[sl, :].astype(jnp.float32)
        rho = rho_ref[sl, :].astype(jnp.float32)

        sigma = jnp.log1p(jnp.exp(rho))                 # softplus(rho)
        inv = pl.reciprocal(sigma, approx=True)         # EUP slot
        inv = inv * (2.0 - sigma * inv)                 # one Newton step (VPU only) -> ~f32 exact
        t = (x - mu) * inv
        val = (-_LOG_SQRT_2PI) - jnp.log(sigma) - 0.5 * (t * t)

        if masked:
            # Row-level validity mask for the partial last block (rows beyond the
            # array edge contain undefined DMA data -> select them to 0).
            row = r0 + lax.broadcasted_iota(jnp.int32, (strip_rows, LANE), 0)
            val = jnp.where(row < valid_last, val, 0.0)

        # (strip, 128) -> (strip/8, 8, 128) -> VPU adds -> (8, 128) partial sum
        return val.reshape(strip_rows // 8, 8, LANE).sum(axis=0)

    def reduce_block(refs, masked):
        zero = jnp.zeros((8, LANE), jnp.float32)
        return lax.fori_loop(
            0, n_strips, lambda s, acc: acc + strip_sum(refs, s, masked), zero)

    def kernel(x_ref, mu_ref, rho_ref, out_ref):
        refs = (x_ref, mu_ref, rho_ref)
        if not needs_mask:
            out_ref[0] = reduce_block(refs, False)
        elif num_blocks == 1:
            out_ref[0] = reduce_block(refs, True)
        else:
            i = pl.program_id(0)

            @pl.when(i != num_blocks - 1)
            def _():
                out_ref[0] = reduce_block(refs, False)

            @pl.when(i == num_blocks - 1)
            def _():
                out_ref[0] = reduce_block(refs, True)

    return kernel


@jax.jit
def gaussian_log_prob_sum(x, mu, rho):
    """Summed Gaussian log-probability, matching the PyTorch forward."""
    total = x.size
    pack = _sublane_pack(x.dtype, mu.dtype, rho.dtype)
    rows = total // LANE                  # number of full 128-lane rows
    main = rows * LANE
    tail = total - main                   # < 128 elements, handled in plain JAX

    # Tiny tensors: Pallas dispatch overhead dominates -> pure JAX.
    if rows < pack:
        return jnp.sum(_logprob_plain(x, mu, rho))

    strip_rows = STRIP_ROWS if rows >= STRIP_ROWS else pack
    tile_rows = min(MAX_TILE_ROWS, (rows // strip_rows) * strip_rows)
    num_blocks = (rows + tile_rows - 1) // tile_rows
    valid_last = rows - (num_blocks - 1) * tile_rows

    def flat2d(a):
        a = jnp.ravel(a)
        if tail:
            # Only non-128-multiple sizes pay this prefix copy; aligned tensors reshape for free.
            a = a[:main]
        return a.reshape(rows, LANE)

    x2, mu2, rho2 = flat2d(x), flat2d(mu), flat2d(rho)

    in_spec = pl.BlockSpec((tile_rows, LANE), lambda i: (i, 0))
    out_spec = pl.BlockSpec((1, 8, LANE), lambda i: (i, 0, 0))

    in_bytes = main * (x.dtype.itemsize + mu.dtype.itemsize + rho.dtype.itemsize)
    out_bytes = num_blocks * 8 * LANE * 4
    cost = pl.CostEstimate(flops=10 * main,
                           transcendentals=4 * main,
                           bytes_accessed=in_bytes + out_bytes)

    partials = pl.pallas_call(
        _make_kernel(tile_rows, strip_rows, num_blocks, valid_last),
        out_shape=jax.ShapeDtypeStruct((num_blocks, 8, LANE), jnp.float32),
        grid=(num_blocks,),
        in_specs=[in_spec, in_spec, in_spec],
        out_specs=out_spec,
        compiler_params=pltpu.CompilerParams(
            dimension_semantics=("parallel",),      # no carried accumulator -> both TCs on v7x
            vmem_limit_bytes=VMEM_LIMIT_BYTES),
        cost_estimate=cost,
    )(x2, mu2, rho2)

    result = jnp.sum(partials)
    if tail:
        xt = jnp.ravel(x)[main:]
        mut = jnp.ravel(mu)[main:]
        rhot = jnp.ravel(rho)[main:]
        result = result + jnp.sum(_logprob_plain(xt, mut, rhot))
    return result


if __name__ == "__main__":
    key = jax.random.PRNGKey(0)
    kx, kmu, krho = jax.random.split(key, 3)

    def check(shape, dtype=jnp.float32):
        x = jax.random.normal(kx, shape, dtype=jnp.float32)
        mu = jax.random.normal(kmu, shape, dtype=jnp.float32) * 0.1
        rho = jax.random.normal(krho, shape, dtype=jnp.float32) * 0.5 - 3.0
        x, mu, rho = x.astype(dtype), mu.astype(dtype), rho.astype(dtype)
        out = jax.block_until_ready(gaussian_log_prob_sum(x, mu, rho))
        ref = jnp.sum(_logprob_plain(x, mu, rho))
        assert jnp.allclose(out, ref, rtol=2e-3, atol=1e-2), (shape, dtype, out, ref)

    # Parameter-shaped tensor (Bayesian layer weights); 128-aligned -> free reshape, no mask.
    check((2, 4, 16, 16))
    # Ragged size (not a multiple of 128): prefix kernel + masked last block + plain-JAX tail.
    check((3, 5, 7, 11))
    # Large enough to exercise the multi-block grid with a partial, masked last block.
    check((3000, 128))
    # bf16 inputs: 16-row sublane packing, half the HBM bytes, f32 math inside the kernel.
    check((64, 384), jnp.bfloat16)

    print("KERNEL_OK")
</pallas_src>

<mosaic_0001>
module attributes {stable_mosaic.version = 11 : i64} {
  func.func @kernel(%arg0: i32, %arg1: memref<16x128xf32, #tpu.memory_space<vmem>>, %arg2: memref<16x128xf32, #tpu.memory_space<vmem>>, %arg3: memref<16x128xf32, #tpu.memory_space<vmem>>, %arg4: memref<1x8x128xf32, #tpu.memory_space<vmem>>) attributes {dimension_semantics = [#tpu.dimension_semantics<parallel>], iteration_bounds = array<i64: 1>, scalar_prefetch = 0 : i64, scratch_operands = 0 : i64, tpu.core_type = #tpu.core_type<tc>, window_params = [{transform_indices = @transform_0, window_bounds = array<i64: 16, 128>}, {transform_indices = @transform_1, window_bounds = array<i64: 16, 128>}, {transform_indices = @transform_2, window_bounds = array<i64: 16, 128>}, {transform_indices = @transform_3, window_bounds = array<i64: 1, 8, 128>}]} {
    %cst = arith.constant 0.000000e+00 : f32
    %0 = vector.broadcast %cst : f32 to vector<8x128xf32>
    %c0_i32 = arith.constant 0 : i32
    %c2_i32 = arith.constant 2 : i32
    %1 = arith.addi %c0_i32, %c2_i32 : i32
    %c1_i32 = arith.constant 1 : i32
    %2 = scf.for %arg5 = %c0_i32 to %1 step %c1_i32 iter_args(%arg6 = %0) -> (vector<8x128xf32>)  : i32 {
      %c8_i32 = arith.constant 8 : i32
      %6 = arith.muli %arg5, %c8_i32 : i32
      %7 = tpu.assume_multiple %6, 8 : i32
      %8 = arith.index_cast %7 : i32 to index
      %c0_3 = arith.constant 0 : index
      %9 = vector.load %arg1[%8, %c0_3] : memref<16x128xf32, #tpu.memory_space<vmem>>, vector<8x128xf32>
      %10 = arith.index_cast %7 : i32 to index
      %c0_4 = arith.constant 0 : index
      %11 = vector.load %arg2[%10, %c0_4] : memref<16x128xf32, #tpu.memory_space<vmem>>, vector<8x128xf32>
      %12 = arith.index_cast %7 : i32 to index
      %c0_5 = arith.constant 0 : index
      %13 = vector.load %arg3[%12, %c0_5] : memref<16x128xf32, #tpu.memory_space<vmem>>, vector<8x128xf32>
      %14 = math.exp %13 : vector<8x128xf32>
      %15 = math.log1p %14 : vector<8x128xf32>
      %16 = tpu.reciprocal %15 {approx = true} : vector<8x128xf32> -> vector<8x128xf32>
      %17 = arith.mulf %15, %16 : vector<8x128xf32>
      %cst_6 = arith.constant 2.000000e+00 : f32
      %18 = vector.broadcast %cst_6 : f32 to vector<8x128xf32>
      %19 = arith.subf %18, %17 : vector<8x128xf32>
      %20 = arith.mulf %16, %19 : vector<8x128xf32>
      %21 = arith.subf %9, %11 : vector<8x128xf32>
      %22 = arith.mulf %21, %20 : vector<8x128xf32>
      %23 = math.log %15 : vector<8x128xf32>
      %cst_7 = arith.constant -0.918933331 : f32
      %24 = vector.broadcast %cst_7 : f32 to vector<8x128xf32>
      %25 = arith.subf %24, %23 : vector<8x128xf32>
      %26 = arith.mulf %22, %22 : vector<8x128xf32>
      %cst_8 = arith.constant 5.000000e-01 : f32
      %27 = vector.broadcast %cst_8 : f32 to vector<8x128xf32>
      %28 = arith.mulf %27, %26 : vector<8x128xf32>
      %29 = arith.subf %25, %28 : vector<8x128xf32>
      %30 = vector.shape_cast %29 : vector<8x128xf32> to vector<1x8x128xf32>
      %cst_9 = arith.constant dense<0.000000e+00> : vector<8x128xf32>
      %31 = vector.multi_reduction <add>, %30, %cst_9 [0] : vector<1x8x128xf32> to vector<8x128xf32>
      %32 = arith.addf %arg6, %31 : vector<8x128xf32>
      scf.yield %32 : vector<8x128xf32>
    }
    %c2_i32_0 = arith.constant 2 : i32
    %c0 = arith.constant 0 : index
    %c0_1 = arith.constant 0 : index
    %c0_2 = arith.constant 0 : index
    %3 = vector.load %arg4[%c0, %c0_1, %c0_2] : memref<1x8x128xf32, #tpu.memory_space<vmem>>, vector<1x8x128xf32>
    %4 = vector.shape_cast %3 : vector<1x8x128xf32> to vector<8x128xf32>
    %5 = vector.shape_cast %2 : vector<8x128xf32> to vector<1x8x128xf32>
    tpu.vector_store %arg4[%c0, %c0_1, %c0_2], %5 {strides = array<i32>} : memref<1x8x128xf32, #tpu.memory_space<vmem>>, vector<1x8x128xf32>,
    return
  }
  func.func @transform_0(%arg0: i32) -> (i32, i32) {
    %c0_i32 = arith.constant 0 : i32
    %c0_i32_0 = arith.constant 0 : i32
    return %arg0, %c0_i32 : i32, i32
  }
  func.func @transform_1(%arg0: i32) -> (i32, i32) {
    %c0_i32 = arith.constant 0 : i32
    %c0_i32_0 = arith.constant 0 : i32
    return %arg0, %c0_i32 : i32, i32
  }
  func.func @transform_2(%arg0: i32) -> (i32, i32) {
    %c0_i32 = arith.constant 0 : i32
    %c0_i32_0 = arith.constant 0 : i32
    return %arg0, %c0_i32 : i32, i32
  }
  func.func @transform_3(%arg0: i32) -> (i32, i32, i32) {
    %c0_i32 = arith.constant 0 : i32
    %c0_i32_0 = arith.constant 0 : i32
    %c0_i32_1 = arith.constant 0 : i32
    return %arg0, %c0_i32, %c0_i32_0 : i32, i32, i32
  }
}

</mosaic_0001>

<llo_original>
// kernel: gaussian_log_prob_sum.1
$region0: #{gaussian_log_prob_sum.1}
  #allocation0 [shape = 'u32[]', space=smem, size = 0x4, offset = 0x4, fixed_abs, tag = 'smem constant byte address 0x4 - core index']
  #allocation1 [shape = 'u32[144,128]{1,0:T(1,128)}', space=vmem, size = 0x12000, scoped, tag = 'internal scratch']
  %s0 = inlined_call_operand.vmem [shape: f32[16,128], index: 0, kind: input, shape index: {}]
  %s1 = inlined_call_operand.vmem [shape: f32[16,128], index: 1, kind: input, shape index: {}]
  %s2 = inlined_call_operand.vmem [shape: f32[16,128], index: 2, kind: input, shape index: {}]
  %s3 = inlined_call_operand.vmem [shape: f32[1,8,128], index: 3, kind: output, shape index: {}]
  %s4 = sld [smem:[#allocation0]]
  $region29: #{gaussian_log_prob_sum.1} parent=0
    _
  %s6 = ssub.s32 1, %s4
  %s7 = scalar_select 0, %s6, %s4
  // Predicated region
  $region2: #{gaussian_log_prob_sum.1} parent=0 // pred_check
    _
  $region3: #{gaussian_log_prob_sum.1} parent=0 // pred_check_branch
    %9 = sbr.rel (0) target = $region5
  $region4: #{gaussian_log_prob_sum.1} parent=0 // pred_region
    _
  $region5: #{gaussian_log_prob_sum.1} parent=0 // pred_fallthru
    _
  // Predicated region
  $region6: #{gaussian_log_prob_sum.1} parent=0 // pred_check
    _
  $region7: #{gaussian_log_prob_sum.1} parent=0 // pred_check_branch
    %11 = sbr.rel (0) target = $region9
  $region8: #{gaussian_log_prob_sum.1} parent=0 // pred_region
    _
  $region9: #{gaussian_log_prob_sum.1} parent=0 // pred_fallthru
    _
  // Predicated region
  $region10: #{gaussian_log_prob_sum.1} parent=0 // pred_check
    _
  $region11: #{gaussian_log_prob_sum.1} parent=0 // pred_check_branch
    %13 = sbr.rel (0) target = $region13
  $region12: #{gaussian_log_prob_sum.1} parent=0 // pred_region
    _
  $region13: #{gaussian_log_prob_sum.1} parent=0 // pred_fallthru
    _
  loop: start=0, step=1, limit=2
  $region14: #{gaussian_log_prob_sum.1} parent=0 // loop_pre_header
    _
  $region15: #{gaussian_log_prob_sum.1} parent=0 // loop_header
    %s15 = sphi 0, %s19
    %p16 = scmp.ge.s32.totalorder %s15, 2
    %v20 = vphi 0.0, %v52
  $region16: #{gaussian_log_prob_sum.1} parent=0 // loop_header_branch
    %18 = sbr.rel (%p16) target = $region20
  $region17: #{gaussian_log_prob_sum.1} parent=0 // loop_body
    %s21 = smul.u32 %s15, 8
    %s22 = scalar_lea.vmem %s0, %s21
    %v23 = vld [vmem:[%s22] sm:$0xff]
    %s24 = scalar_lea.vmem %s1, %s21
    %v25 = vld [vmem:[%s24] sm:$0xff]
    %s26 = scalar_lea.vmem %s2, %s21
    %v27 = vld [vmem:[%s26] sm:$0xff]
    %v28 = vmul.f32 %v27, 1.442695
    %v29 = vpow.pop %v28
    %v30 = vadd.f32 %v29, 1.0
    %v31 = vlog2.pop %v30
    %v32 = vmul.f32 %v31, 0.6931472
    %v33 = vmul.f32 -0.5, %v29
    %v34 = vadd.f32 %v33, 1.0
    %v35 = vmul.f32 %v34, %v29
    %v36 = vand.u32 2147483647, %v29
    %vm37 = vcmp.lt.f32.partialorder %v36, 0.0004427343
    %v38 = vsel %vm37, %v35, %v32
    %v39 = vrcp.pop %v38
    %v40 = vmul.f32 %v38, %v39
    %v41 = vsub.f32 2.0, %v40
    %v42 = vmul.f32 %v39, %v41
    %v43 = vsub.f32 %v23, %v25
    %v44 = vmul.f32 %v43, %v42
    %v45 = vlog2.pop %v38
    %v46 = vmul.f32 %v45, 0.6931472
    %v47 = vsub.f32 -0.91893333, %v46
    %v48 = vmul.f32 %v44, %v44
    %v49 = vmul.f32 %v48, 0.5
    %v50 = vsub.f32 %v47, %v49
    %v51 = vadd.f32 %v50, 0.0
    %v52 = vadd.f32 %v20, %v51
  $region18: #{gaussian_log_prob_sum.1} parent=0 // loop_footer
    %s19 = sadd.s32 1, %s15
  $region19: #{gaussian_log_prob_sum.1} parent=0 // loop_footer_branch
    %14 = sbr.rel target = $region15
  $region20: #{gaussian_log_prob_sum.1} parent=0 // loop_exit
    _
  %53 = vst [vmem:[%s3] sm:$0xff] %v20
  // Predicated region
  $region21: #{gaussian_log_prob_sum.1} parent=0 // pred_check
    _
  $region22: #{gaussian_log_prob_sum.1} parent=0 // pred_check_branch
    %55 = sbr.rel (0) target = $region24
  $region23: #{gaussian_log_prob_sum.1} parent=0 // pred_region
    _
  $region24: #{gaussian_log_prob_sum.1} parent=0 // pred_fallthru
    _
  // Predicated region
  $region25: #{gaussian_log_prob_sum.1} parent=0 // pred_check
    _
  $region26: #{gaussian_log_prob_sum.1} parent=0 // pred_check_branch
    %57 = sbr.rel (0) target = $region28
  $region27: #{gaussian_log_prob_sum.1} parent=0 // pred_region
    _
  $region28: #{gaussian_log_prob_sum.1} parent=0 // pred_fallthru
    _

</llo_original>
